<compile_context>
chip_gen: v5e
topology: v5e:2x2
jax: 0.10.0
libtpu: 0.0.40
codegen_flags: <defaults>
</compile_context>

<pallas_src>
import functools

import jax
import jax.numpy as jnp
from jax.experimental import pallas as pl
from jax.experimental.pallas import tpu as pltpu


def _round_up(x, m):
    return ((x + m - 1) // m) * m


def _sge_kernel(w_ref, b_ref, x_ref, o_ref, *, hw):
    # w_ref/b_ref: (BN, 1, 1) f32 ; x_ref/o_ref: (BN, cg, HW) native dtype.
    x = x_ref[...]
    xf = x if x.dtype == jnp.float32 else x.astype(jnp.float32)
    inv_hw = 1.0 / hw

    # AdaptiveAvgPool2d(1): per-channel spatial mean.
    ch_mean = jnp.sum(xf, axis=2, keepdims=True) * inv_hw        # (BN, cg, 1)

    # xn[g, s] = sum_c x[g, c, s] * ch_mean[g, c]
    xn = jnp.sum(xf * ch_mean, axis=1, keepdims=True)            # (BN, 1, HW)

    # Spatial mean + unbiased (ddof=1) variance, two-pass for precision.
    # The centered buffer `d` is reused for the gate argument, so this costs
    # no additional per-element sweeps vs the one-pass formula.
    mean_xn = jnp.sum(xn, axis=2, keepdims=True) * inv_hw        # (BN, 1, 1)
    d = xn - mean_xn                                             # (BN, 1, HW)
    var = jnp.sum(d * d, axis=2, keepdims=True) * (1.0 / max(hw - 1, 1))
    std = jnp.sqrt(var) + 1e-5                                   # (BN, 1, 1)

    # (xn - mean + 1e-5) / std : reciprocal of the per-row scalar, broadcast.
    t = (d + 1e-5) * pl.reciprocal(std, approx=False)            # (BN, 1, HW)
    gate = jax.nn.sigmoid(t * w_ref[...] + b_ref[...])           # (BN, 1, HW)
    o_ref[...] = x * gate.astype(x.dtype)


def attention_sge(x, weight, bias, *, num_heads, groups, block_rows=None):
    """x: (B, C, H, W) NCHW; weight/bias: (1, groups, 1, 1)."""
    B, C, H, W = x.shape
    assert C % num_heads == 0
    c_head = C // num_heads
    assert c_head % groups == 0
    cg = c_head // groups
    HW = H * W
    N = B * num_heads * groups

    # (B, C, H, W) row-major == (B*num_heads*groups, cg, H*W): free reshape.
    # No padding: last two block dims equal the full array dims, Mosaic masks
    # the trailing partial lanes / rows.
    x_r = x.reshape(N, cg, HW)

    # --- rows per grid step --------------------------------------------------
    itemsize = jnp.dtype(x.dtype).itemsize
    cg_pad = _round_up(cg, 8)
    hw_pad = _round_up(HW, 128)
    row_in = cg_pad * hw_pad * itemsize     # padded VMEM bytes / row (in, out)
    row_f32 = cg_pad * hw_pad * 4           # f32 intermediates / row
    # Per-row footprint: double-buffered input + output, ~2 live f32 temps.
    per_row = 4 * row_in + 2 * row_f32
    budget = 24 * 1024 * 1024               # ~4 MiB input tile; safe on v7x
    bn = max(1, budget // per_row)
    if N >= 4:
        bn = min(bn, N // 4)                # >=4 grid steps: megacore + pipeline
    bn = max(1, min(bn, N))
    if block_rows is not None:              # explicit override (tests)
        bn = max(1, min(block_rows, N))
    # TODO(synk): tile the HW axis too if a single row-group (cg x HW) ever
    # exceeds the per-step VMEM budget (very large spatial extents).

    vmem_limit = int(min(56 * 1024 * 1024,
                         max(bn * per_row + (4 << 20), 16 << 20)))

    # Per-row affine parameters: row n of the (N, cg, HW) view has group
    # n % groups (N is always a multiple of groups).
    w_full = jnp.tile(weight.reshape(groups).astype(jnp.float32),
                      N // groups).reshape(N, 1, 1)
    b_full = jnp.tile(bias.reshape(groups).astype(jnp.float32),
                      N // groups).reshape(N, 1, 1)

    kernel = functools.partial(_sge_kernel, hw=HW)
    out = pl.pallas_call(
        kernel,
        out_shape=jax.ShapeDtypeStruct((N, cg, HW), x.dtype),
        grid=(pl.cdiv(N, bn),),
        in_specs=[
            pl.BlockSpec((bn, 1, 1), lambda i: (i, 0, 0)),    # per-row weight
            pl.BlockSpec((bn, 1, 1), lambda i: (i, 0, 0)),    # per-row bias
            pl.BlockSpec((bn, cg, HW), lambda i: (i, 0, 0)),  # x tile
        ],
        out_specs=pl.BlockSpec((bn, cg, HW), lambda i: (i, 0, 0)),
        compiler_params=pltpu.CompilerParams(
            dimension_semantics=("parallel",),
            vmem_limit_bytes=vmem_limit),
    )(w_full, b_full, x_r)

    return out.reshape(B, C, H, W)


def attention_sge_ref(x, weight, bias, *, num_heads, groups):
    """Pure-JAX reference mirroring the PyTorch forward exactly."""
    B, C, H, W = x.shape
    heads = jnp.split(x, num_heads, axis=1)
    outs = []
    for head in heads:
        b, c = head.shape[0], head.shape[1]
        hd = head.reshape(b * groups, -1, H, W)
        xn = hd * jnp.mean(hd, axis=(2, 3), keepdims=True)
        xn = jnp.sum(xn, axis=1, keepdims=True)
        t = xn.reshape(b * groups, -1)
        t = t - jnp.mean(t, axis=1, keepdims=True) + 1e-5
        std = jnp.std(t, axis=1, keepdims=True, ddof=1) + 1e-5
        t = t / std
        t = t.reshape(b, groups, H, W)
        t = t * weight + bias
        t = t.reshape(b * groups, 1, H, W)
        hd = hd * jax.nn.sigmoid(t)
        outs.append(hd.reshape(b, c, H, W))
    return jnp.concatenate(outs, axis=1)


if __name__ == "__main__":
    def run_case(B, H, W, num_heads, groups, cg, seed, block_rows=None):
        C = num_heads * groups * cg
        key = jax.random.PRNGKey(seed)
        kx, kw, kb = jax.random.split(key, 3)
        x = jax.random.normal(kx, (B, C, H, W), dtype=jnp.float32)
        # Module __init__ uses zeros/ones for weight/bias; perturb so the
        # affine+sigmoid path is actually exercised (deterministic).
        weight = 0.1 * jax.random.normal(kw, (1, groups, 1, 1), dtype=jnp.float32)
        bias = 1.0 + 0.1 * jax.random.normal(kb, (1, groups, 1, 1), dtype=jnp.float32)

        out = attention_sge(x, weight, bias, num_heads=num_heads,
                            groups=groups, block_rows=block_rows)
        out = jax.block_until_ready(out)

        ref = attention_sge_ref(x, weight, bias, num_heads=num_heads, groups=groups)
        assert out.shape == (B, C, H, W)
        assert jnp.allclose(out, ref, atol=1e-5, rtol=1e-5), (
            f"max abs err {jnp.max(jnp.abs(out - ref))}")

    # 1) Aligned spatial size (HW = 256); auto block choice -> 4 grid steps.
    run_case(B=2, H=16, W=16, num_heads=2, groups=2, cg=4, seed=0)
    # 2) Non-128-multiple HW (=100) and a non-divisible trailing grid block
    #    (N=12 rows, bn=5 -> last block partial): exercises Mosaic masking of
    #    partial lanes in the axis=2 reductions and of out-of-range rows.
    run_case(B=2, H=10, W=10, num_heads=2, groups=3, cg=4, seed=1, block_rows=5)

    print("KERNEL_OK")
</pallas_src>

<mosaic_0001>
module attributes {stable_mosaic.version = 11 : i64} {
  func.func @_sge_kernel(%arg0: i32, %arg1: memref<2x1x1xf32, #tpu.memory_space<vmem>>, %arg2: memref<2x1x1xf32, #tpu.memory_space<vmem>>, %arg3: memref<2x4x256xf32, #tpu.memory_space<vmem>>, %arg4: memref<2x4x256xf32, #tpu.memory_space<vmem>>) attributes {dimension_semantics = [#tpu.dimension_semantics<parallel>], iteration_bounds = array<i64: 4>, scalar_prefetch = 0 : i64, scratch_operands = 0 : i64, tpu.core_type = #tpu.core_type<tc>, window_params = [{transform_indices = @transform_0, window_bounds = array<i64: 2, 1, 1>}, {transform_indices = @transform_1, window_bounds = array<i64: 2, 1, 1>}, {transform_indices = @transform_2, window_bounds = array<i64: 2, 4, 256>}, {transform_indices = @transform_3, window_bounds = array<i64: 2, 4, 256>}]} {
    %c0 = arith.constant 0 : index
    %c0_0 = arith.constant 0 : index
    %c0_1 = arith.constant 0 : index
    %0 = vector.load %arg3[%c0, %c0_0, %c0_1] : memref<2x4x256xf32, #tpu.memory_space<vmem>>, vector<2x4x256xf32>
    %cst = arith.constant dense<0.000000e+00> : vector<2x4xf32>
    %1 = vector.multi_reduction <add>, %0, %cst [2] : vector<2x4x256xf32> to vector<2x4xf32>
    %2 = vector.shape_cast %1 : vector<2x4xf32> to vector<2x4x1xf32>
    %cst_2 = arith.constant 3.906250e-03 : f32
    %3 = vector.broadcast %cst_2 : f32 to vector<2x4x1xf32>
    %4 = arith.mulf %2, %3 : vector<2x4x1xf32>
    %5 = vector.broadcast %4 : vector<2x4x1xf32> to vector<2x4x256xf32>
    %6 = arith.mulf %0, %5 : vector<2x4x256xf32>
    %cst_3 = arith.constant dense<0.000000e+00> : vector<2x256xf32>
    %7 = vector.multi_reduction <add>, %6, %cst_3 [1] : vector<2x4x256xf32> to vector<2x256xf32>
    %8 = vector.shape_cast %7 : vector<2x256xf32> to vector<2x1x256xf32>
    %cst_4 = arith.constant dense<0.000000e+00> : vector<2x1xf32>
    %9 = vector.multi_reduction <add>, %8, %cst_4 [2] : vector<2x1x256xf32> to vector<2x1xf32>
    %10 = vector.shape_cast %9 : vector<2x1xf32> to vector<2x1x1xf32>
    %cst_5 = arith.constant 3.906250e-03 : f32
    %11 = vector.broadcast %cst_5 : f32 to vector<2x1x1xf32>
    %12 = arith.mulf %10, %11 : vector<2x1x1xf32>
    %13 = vector.broadcast %12 : vector<2x1x1xf32> to vector<2x1x256xf32>
    %14 = arith.subf %8, %13 : vector<2x1x256xf32>
    %15 = arith.mulf %14, %14 : vector<2x1x256xf32>
    %cst_6 = arith.constant dense<0.000000e+00> : vector<2x1xf32>
    %16 = vector.multi_reduction <add>, %15, %cst_6 [2] : vector<2x1x256xf32> to vector<2x1xf32>
    %17 = vector.shape_cast %16 : vector<2x1xf32> to vector<2x1x1xf32>
    %cst_7 = arith.constant 0.00392156886 : f32
    %18 = vector.broadcast %cst_7 : f32 to vector<2x1x1xf32>
    %19 = arith.mulf %17, %18 : vector<2x1x1xf32>
    %20 = math.sqrt %19 : vector<2x1x1xf32>
    %cst_8 = arith.constant 9.99999974E-6 : f32
    %21 = vector.broadcast %cst_8 : f32 to vector<2x1x1xf32>
    %22 = arith.addf %20, %21 : vector<2x1x1xf32>
    %cst_9 = arith.constant 9.99999974E-6 : f32
    %23 = vector.broadcast %cst_9 : f32 to vector<2x1x256xf32>
    %24 = arith.addf %14, %23 : vector<2x1x256xf32>
    %25 = tpu.reciprocal %22 : vector<2x1x1xf32> -> vector<2x1x1xf32>
    %26 = vector.broadcast %25 : vector<2x1x1xf32> to vector<2x1x256xf32>
    %27 = arith.mulf %24, %26 : vector<2x1x256xf32>
    %c0_10 = arith.constant 0 : index
    %c0_11 = arith.constant 0 : index
    %c0_12 = arith.constant 0 : index
    %28 = vector.load %arg1[%c0_10, %c0_11, %c0_12] : memref<2x1x1xf32, #tpu.memory_space<vmem>>, vector<2x1x1xf32>
    %29 = vector.broadcast %28 : vector<2x1x1xf32> to vector<2x1x256xf32>
    %30 = arith.mulf %27, %29 : vector<2x1x256xf32>
    %c0_13 = arith.constant 0 : index
    %c0_14 = arith.constant 0 : index
    %c0_15 = arith.constant 0 : index
    %31 = vector.load %arg2[%c0_13, %c0_14, %c0_15] : memref<2x1x1xf32, #tpu.memory_space<vmem>>, vector<2x1x1xf32>
    %32 = vector.broadcast %31 : vector<2x1x1xf32> to vector<2x1x256xf32>
    %33 = arith.addf %30, %32 : vector<2x1x256xf32>
    %34 = arith.negf %33 : vector<2x1x256xf32>
    %35 = math.exp %34 : vector<2x1x256xf32>
    %cst_16 = arith.constant 1.000000e+00 : f32
    %36 = vector.broadcast %cst_16 : f32 to vector<2x1x256xf32>
    %37 = arith.addf %36, %35 : vector<2x1x256xf32>
    %38 = arith.divf %36, %37 : vector<2x1x256xf32>
    %39 = vector.broadcast %38 : vector<2x1x256xf32> to vector<2x4x256xf32>
    %40 = arith.mulf %0, %39 : vector<2x4x256xf32>
    %c0_17 = arith.constant 0 : index
    %c0_18 = arith.constant 0 : index
    %c0_19 = arith.constant 0 : index
    %41 = vector.load %arg4[%c0_17, %c0_18, %c0_19] : memref<2x4x256xf32, #tpu.memory_space<vmem>>, vector<2x4x256xf32>
    tpu.vector_store %arg4[%c0_17, %c0_18, %c0_19], %40 {strides = array<i32>} : memref<2x4x256xf32, #tpu.memory_space<vmem>>, vector<2x4x256xf32>,
    return
  }
  func.func @transform_0(%arg0: i32) -> (i32, i32, i32) {
    %c0_i32 = arith.constant 0 : i32
    %c0_i32_0 = arith.constant 0 : i32
    %c0_i32_1 = arith.constant 0 : i32
    return %arg0, %c0_i32, %c0_i32_0 : i32, i32, i32
  }
  func.func @transform_1(%arg0: i32) -> (i32, i32, i32) {
    %c0_i32 = arith.constant 0 : i32
    %c0_i32_0 = arith.constant 0 : i32
    %c0_i32_1 = arith.constant 0 : i32
    return %arg0, %c0_i32, %c0_i32_0 : i32, i32, i32
  }
  func.func @transform_2(%arg0: i32) -> (i32, i32, i32) {
    %c0_i32 = arith.constant 0 : i32
    %c0_i32_0 = arith.constant 0 : i32
    %c0_i32_1 = arith.constant 0 : i32
    return %arg0, %c0_i32, %c0_i32_0 : i32, i32, i32
  }
  func.func @transform_3(%arg0: i32) -> (i32, i32, i32) {
    %c0_i32 = arith.constant 0 : i32
    %c0_i32_0 = arith.constant 0 : i32
    %c0_i32_1 = arith.constant 0 : i32
    return %arg0, %c0_i32, %c0_i32_0 : i32, i32, i32
  }
}

</mosaic_0001>

<llo_original>
// kernel: tpu_custom_call.1
$region0: #{tpu_custom_call.1}
  #allocation0 [shape = 'u32[]', space=smem, size = 0x4, offset = 0x4, fixed_abs, tag = 'smem constant byte address 0x4 - core index']
  #allocation1 [shape = 'u32[72,128]{1,0:T(1,128)}', space=vmem, size = 0x9000, scoped, tag = 'internal scratch']
  %s0 = inlined_call_operand.vmem [shape: f32[8,1,1], index: 0, kind: input, shape index: {}]
  %s1 = inlined_call_operand.vmem [shape: f32[8,1,1], index: 1, kind: input, shape index: {}]
  %s2 = inlined_call_operand.hbm [shape: f32[8,4,256], index: 2, kind: input, shape index: {}]
  %s3 = inlined_call_operand.hbm [shape: f32[8,4,256], index: 3, kind: output, shape index: {}]
  %s4 = sld [smem:[#allocation0]]
  $region49: #{tpu_custom_call.1} parent=0
    _
  %s6 = ssub.s32 1, %s4
  %s7 = scalar_select 0, %s6, %s4
  $region1: #{tpu_custom_call.1} parent=0
    #allocation2 [shape = 'u8[16384]{0}', space=vmem, size = 0x4000, scoped, tag = 'input window, operand 2']
    #allocation3 [shape = 's32[2]{0}', space=sflag, size = 0x8, scoped, tag = 'scoped memory for tpu_custom_call.1']
    #allocation4 [shape = 's32[2]{0}', space=sflag, size = 0x8, scoped, tag = 'scoped memory for tpu_custom_call.1']
    #allocation5 [shape = 'u8[16384]{0}', space=vmem, size = 0x4000, scoped, tag = 'output window, operand 0']
    %8 = vsyncpa [#allocation3], 0
    %s9 = scalar_lea.sflag [#allocation3], 1
    %10 = vsyncpa %s9, 0
    %11 = vsyncpa [#allocation4], 0
    %s12 = scalar_lea.sflag [#allocation4], 1
    %13 = vsyncpa %s12, 0
    loop: start=0, step=1, limit=6
    $region2: #{tpu_custom_call.1} parent=1 // loop_pre_header
      _
    $region3: #{tpu_custom_call.1} parent=1 // loop_header
      %s15 = sphi 0, %s19
      %p16 = scmp.ge.s32.totalorder %s15, 6
      %s25 = sphi 0, %s27
      %s28 = sphi 0, %s25
      %s29 = sphi 0, %s28
      %s45 = sphi 0, %s29
      %s51 = sphi 0, %s53
      %s54 = sphi 0, %s51
      %s55 = sphi 0, %s54
      %s71 = sphi 0, %s55
      %s77 = sphi 0, %s79
      %s80 = sphi 0, %s77
      %s81 = sphi 0, %s80
      %s97 = sphi 0, %s81
      %s103 = sphi 0, %s105
      %s106 = sphi 0, %s103
      %s107 = sphi 0, %s106
      %s123 = sphi 0, %s107
    $region4: #{tpu_custom_call.1} parent=1 // loop_header_branch
      %18 = sbr.rel (%p16) target = $region8
    $region5: #{tpu_custom_call.1} parent=1 // loop_body
      %s20 = ssub.s32 %s15, 1
      %s21 = ssub.s32 %s15, 2
      %s22 = sadd.s32 %s15, 1
      %s23 = ssub.s32 %s15, %s22
      %p24 = scmp.eq.s32.totalorder %s23, 0
      %s26 = sadd.s32 %s25, 1
      %s27 = scalar_select %p24, %s25, %s26
      %p30 = pneg %p24
      %p31 = scmp.eq.s32.totalorder %s15, 3
      %p32 = por %p30, %p31
      %p33 = scmp.ne.s32.totalorder %s25, %s28
      %p34 = scmp.eq.s32.totalorder %s15, 0
      %p35 = por %p33, %p34
      %p36 = scmp.ne.s32.totalorder %s25, %s28
      %p37 = scmp.eq.s32.totalorder %s20, 3
      %p38 = por %p36, %p37
      %p39 = scmp.ne.s32.totalorder %s28, %s29
      %p40 = scmp.eq.s32.totalorder %s20, 0
      %p41 = por %p39, %p40
      %p42 = scmp.ne.s32.totalorder %s28, %s29
      %p43 = scmp.eq.s32.totalorder %s21, 3
      %p44 = por %p42, %p43
      %p46 = scmp.ne.s32.totalorder %s29, %s45
      %p47 = scmp.eq.s32.totalorder %s21, 0
      %p48 = por %p46, %p47
      %s49 = ssub.s32 %s15, %s22
      %p50 = scmp.eq.s32.totalorder %s49, 0
      %s52 = sadd.s32 %s51, 1
      %s53 = scalar_select %p50, %s51, %s52
      %p56 = pneg %p50
      %p57 = scmp.eq.s32.totalorder %s15, 3
      %p58 = por %p56, %p57
      %p59 = scmp.ne.s32.totalorder %s51, %s54
      %p60 = scmp.eq.s32.totalorder %s15, 0
      %p61 = por %p59, %p60
      %p62 = scmp.ne.s32.totalorder %s51, %s54
      %p63 = scmp.eq.s32.totalorder %s20, 3
      %p64 = por %p62, %p63
      %p65 = scmp.ne.s32.totalorder %s54, %s55
      %p66 = scmp.eq.s32.totalorder %s20, 0
      %p67 = por %p65, %p66
      %p68 = scmp.ne.s32.totalorder %s54, %s55
      %p69 = scmp.eq.s32.totalorder %s21, 3
      %p70 = por %p68, %p69
      %p72 = scmp.ne.s32.totalorder %s55, %s71
      %p73 = scmp.eq.s32.totalorder %s21, 0
      %p74 = por %p72, %p73
      %s75 = ssub.s32 %s15, %s22
      %p76 = scmp.eq.s32.totalorder %s75, 0
      %s78 = sadd.s32 %s77, 1
      %s79 = scalar_select %p76, %s77, %s78
      %p82 = pneg %p76
      %p83 = scmp.eq.s32.totalorder %s15, 3
      %p84 = por %p82, %p83
      %p85 = scmp.ne.s32.totalorder %s77, %s80
      %p86 = scmp.eq.s32.totalorder %s15, 0
      %p87 = por %p85, %p86
      %p88 = scmp.ne.s32.totalorder %s77, %s80
      %p89 = scmp.eq.s32.totalorder %s20, 3
      %p90 = por %p88, %p89
      %p91 = scmp.ne.s32.totalorder %s80, %s81
      %p92 = scmp.eq.s32.totalorder %s20, 0
      %p93 = por %p91, %p92
      %p94 = scmp.ne.s32.totalorder %s80, %s81
      %p95 = scmp.eq.s32.totalorder %s21, 3
      %p96 = por %p94, %p95
      %p98 = scmp.ne.s32.totalorder %s81, %s97
      %p99 = scmp.eq.s32.totalorder %s21, 0
      %p100 = por %p98, %p99
      %s101 = ssub.s32 %s15, %s22
      %p102 = scmp.eq.s32.totalorder %s101, 0
      %s104 = sadd.s32 %s103, 1
      %s105 = scalar_select %p102, %s103, %s104
      %p108 = pneg %p102
      %p109 = scmp.eq.s32.totalorder %s15, 3
      %p110 = por %p108, %p109
      %p111 = scmp.ne.s32.totalorder %s103, %s106
      %p112 = scmp.eq.s32.totalorder %s15, 0
      %p113 = por %p111, %p112
      %p114 = scmp.ne.s32.totalorder %s103, %s106
      %p115 = scmp.eq.s32.totalorder %s20, 3
      %p116 = por %p114, %p115
      %p117 = scmp.ne.s32.totalorder %s106, %s107
      %p118 = scmp.eq.s32.totalorder %s20, 0
      %p119 = por %p117, %p118
      %p120 = scmp.ne.s32.totalorder %s106, %s107
      %p121 = scmp.eq.s32.totalorder %s21, 3
      %p122 = por %p120, %p121
      %p124 = scmp.ne.s32.totalorder %s107, %s123
      %p125 = scmp.eq.s32.totalorder %s21, 0
      %p126 = por %p124, %p125
      %p127 = scmp.le.s32.totalorder 1, %s15
      %p128 = scmp.lt.s32.totalorder %s15, 5
      %p129 = pnand %p127, %p128
      %p130 = pneg %p129
      // Predicated region
      $region9: #{tpu_custom_call.1} parent=5 // pred_check
        _
      $region10: #{tpu_custom_call.1} parent=5 // pred_check_branch
        %132 = sbr.rel (%p129) target = $region12
      $region11: #{tpu_custom_call.1} parent=5 // pred_region
        %s133 = ssub.s32 %s15, 1
      $region12: #{tpu_custom_call.1} parent=5 // pred_fallthru
        _
      %p134 = scmp.lt.s32.totalorder %s15, 4
      // Predicated region
      $region13: #{tpu_custom_call.1} parent=5 // pred_check
        %p135 = pneg %p134
      $region14: #{tpu_custom_call.1} parent=5 // pred_check_branch
        %137 = sbr.rel (%p135) target = $region16
      $region15: #{tpu_custom_call.1} parent=5 // pred_region
        // Predicated region
        $region17: #{tpu_custom_call.1} parent=15 // pred_check
          %p138 = pneg %p35
        $region18: #{tpu_custom_call.1} parent=15 // pred_check_branch
          %140 = sbr.rel (%p138) target = $region20
        $region19: #{tpu_custom_call.1} parent=15 // pred_region
          %s141 = smul.u32 2, %s15
          %p142 = scmp.lt.s32.totalorder %s141, 7
          %s143 = scalar_select %p142, %s141, 7
          %s144 = scalar_lea.vmem %s0, %s143
          %s145 = smul.u32 2, %s15
        $region20: #{tpu_custom_call.1} parent=15 // pred_fallthru
          _
        // Predicated region
        $region21: #{tpu_custom_call.1} parent=15 // pred_check
          %p146 = pneg %p61
        $region22: #{tpu_custom_call.1} parent=15 // pred_check_branch
          %148 = sbr.rel (%p146) target = $region24
        $region23: #{tpu_custom_call.1} parent=15 // pred_region
          %s149 = smul.u32 2, %s15
          %p150 = scmp.lt.s32.totalorder %s149, 7
          %s151 = scalar_select %p150, %s149, 7
          %s152 = scalar_lea.vmem %s1, %s151
          %s153 = smul.u32 2, %s15
        $region24: #{tpu_custom_call.1} parent=15 // pred_fallthru
          _
        // Predicated region
        $region25: #{tpu_custom_call.1} parent=15 // pred_check
          %p154 = pneg %p87
        $region26: #{tpu_custom_call.1} parent=15 // pred_check_branch
          %156 = sbr.rel (%p154) target = $region28
        $region27: #{tpu_custom_call.1} parent=15 // pred_region
          %s157 = sand.u32 %s77, 1
          %s158 = scalar_lea.sflag [#allocation3], %s157
          %s159 = sand.u32 %s77, 1
          %s160 = smul.addr %s159, 16
          %s161 = scalar_lea.vmem [#allocation2], %s160
          %s162 = smul.u32 2, %s15
          %164 = vsyncadd %s158, 0
          %s165 = smul.addr %s162, 2
          %s166 = smul.addr %s165, 4
          %s167 = scalar_lea.hbm %s2, %s166
          %s168 = sshll.u32 %s167, 4
          %s169 = int_to_ptr.hbm [resolvable:$true] %s168
          %s170 = sshll.u32 %s161, 4
          %s171 = int_to_ptr.vmem [resolvable:$true] %s170
          %176 = dma.hbm_to_vmem [thread:$0]  %s169, 256, %s171, %s158, 128, 128, 8
        $region28: #{tpu_custom_call.1} parent=15 // pred_fallthru
          _
      $region16: #{tpu_custom_call.1} parent=5 // pred_fallthru
        _
      %p177 = scmp.le.s32.totalorder 1, %s15
      %p178 = scmp.lt.s32.totalorder %s15, 5
      %p179 = pnand %p177, %p178
      %p180 = pneg %p179
      // Predicated region
      $region29: #{tpu_custom_call.1} parent=5 // pred_check
        _
      $region30: #{tpu_custom_call.1} parent=5 // pred_check_branch
        %182 = sbr.rel (%p179) target = $region32
      $region31: #{tpu_custom_call.1} parent=5 // pred_region
        %s183 = ssub.s32 %s15, 1
        %s184 = sand.u32 %s80, 1
        %s185 = scalar_lea.sflag [#allocation3], %s184
        %s186 = sand.u32 %s80, 1
        %s187 = smul.addr %s186, 16
        %s188 = scalar_lea.vmem [#allocation2], %s187
        // Predicated region
        $region33: #{tpu_custom_call.1} parent=31 // pred_check
          %p189 = pneg %p93
        $region34: #{tpu_custom_call.1} parent=31 // pred_check_branch
          %191 = sbr.rel (%p189) target = $region36
        $region35: #{tpu_custom_call.1} parent=31 // pred_region
          %193 = dma.done %s185, 256
        $region36: #{tpu_custom_call.1} parent=31 // pred_fallthru
          _
        %s194 = smul.u32 2, %s20
        %p195 = scmp.lt.s32.totalorder %s194, 7
        %s196 = scalar_select %p195, %s194, 7
        %s197 = scalar_lea.vmem %s0, %s196
        %p198 = pneg %p41
        %p199 = pneg %p38
        %s200 = smul.u32 2, %s20
        %p201 = scmp.lt.s32.totalorder %s200, 7
        %s202 = scalar_select %p201, %s200, 7
        %s203 = scalar_lea.vmem %s1, %s202
        %p204 = pneg %p67
        %p205 = pneg %p64
        %s206 = sand.u32 %s80, 1
        %s207 = scalar_lea.sflag [#allocation3], %s206
        %s208 = sand.u32 %s80, 1
        %s209 = smul.addr %s208, 16
        %s210 = scalar_lea.vmem [#allocation2], %s209
        %p211 = pneg %p93
        %p212 = pneg %p90
        %p213 = pneg %p119
        %p214 = pneg %p116
        %s215 = sand.u32 %s106, 1
        %s216 = scalar_lea.sflag [#allocation4], %s215
        %s217 = sand.u32 %s106, 1
        %s218 = smul.addr %s217, 16
        %s219 = scalar_lea.vmem [#allocation5], %s218
        %s220 = smul.u32 2, %s20
        %p221 = scmp.lt.s32.totalorder %s220, 7
        %s222 = scalar_select %p221, %s220, 7
        %s223 = scalar_lea.vmem %s0, %s222
        %s224 = smul.u32 2, %s20
        %s225 = smul.u32 2, %s20
        %p226 = scmp.lt.s32.totalorder %s225, 7
        %s227 = scalar_select %p226, %s225, 7
        %s228 = scalar_lea.vmem %s1, %s227
        %s229 = smul.u32 2, %s20
        %s230 = smul.u32 2, %s20
        %s231 = smul.u32 2, %s20
        %v232 = vld [vmem:[%s188] sm:$0xff]
        %v233 = vld [vmem:[%s188 + $0x8] sm:$0xff]
        %236 = vst [vmem:[#allocation1] ss:$2 sm:$0xff] %v232
        %v237 = vld.sshfl [vmem:[#allocation1] sm:$0xff pattern:$0x75316420]
        %v238 = vld.sshfl [vmem:[#allocation1 + $0x8] sm:$0xff pattern:$0x75316420]
        %s239 = scalar_lea.vmem [#allocation1], 16
        %240 = vst [vmem:[%s239] ss:$2 sm:$0xff] %v233
        %v241 = vld.sshfl [vmem:[#allocation1 + $0x10] sm:$0xff pattern:$0x75316420]
        %v242 = vld.sshfl [vmem:[#allocation1 + $0x18] sm:$0xff pattern:$0x75316420]
        %vm247 = vcmask 1043456
        %v248 = vsel %vm247, %v237, 0.0
        %v249 = vsel %vm247, %v238, 0.0
        %v250 = vadd.f32 %v248, %v249
        %251 = vadd.xlane.f32.xlu0 %v250
        %v252 = vpop.xlane.xlu0 %251
        %v253 = vsel %vm247, %v241, 0.0
        %v254 = vsel %vm247, %v242, 0.0
        %v255 = vadd.f32 %v253, %v254
        %256 = vadd.xlane.f32.xlu0 %v255
        %v257 = vpop.xlane.xlu0 %256
        %v258 = vmul.f32 %v252, 0.00390625
        %v259 = vmul.f32 %v257, 0.00390625
        %v263 = vunpack.c.l.s4 839922192
        %v264 = vunpack.c.0.s8 %v263
        %v265 = vperm.slane %v258, %v264
        %v267 = vunpack.c.l.s4 839922192
        %v268 = vunpack.c.0.s8 %v267
        %v269 = vperm.slane %v259, %v268
        %v272 = vmul.f32 %v232, %v265
        %v273 = vmul.f32 %v233, %v269
        %276 = vst [vmem:[#allocation1] ss:$2 sm:$0xff] %v272
        %v277 = vld.sshfl [vmem:[#allocation1] sm:$0xff pattern:$0x75316420]
        %v278 = vld.sshfl [vmem:[#allocation1 + $0x8] sm:$0xff pattern:$0x75316420]
        %s279 = scalar_lea.vmem [#allocation1], 16
        %280 = vst [vmem:[%s279] ss:$2 sm:$0xff] %v273
        %v281 = vld.sshfl [vmem:[#allocation1 + $0x10] sm:$0xff pattern:$0x75316420]
        %v282 = vld.sshfl [vmem:[#allocation1 + $0x18] sm:$0xff pattern:$0x75316420]
        %v287 = vsel %vm247, %v277, 0.0
        %v288 = vrot.slane %v287, 4
        %v289 = vadd.f32 %v287, %v288
        %v290 = vrot.slane %v289, 2
        %v291 = vadd.f32 %v289, %v290
        %v292 = vrot.slane %v291, 1
        %v293 = vadd.f32 %v291, %v292
        %v294 = vsel %vm247, %v278, 0.0
        %v295 = vrot.slane %v294, 4
        %v296 = vadd.f32 %v294, %v295
        %v297 = vrot.slane %v296, 2
        %v298 = vadd.f32 %v296, %v297
        %v299 = vrot.slane %v298, 1
        %v300 = vadd.f32 %v298, %v299
        %v301 = vsel %vm247, %v281, 0.0
        %v302 = vrot.slane %v301, 4
        %v303 = vadd.f32 %v301, %v302
        %v304 = vrot.slane %v303, 2
        %v305 = vadd.f32 %v303, %v304
        %v306 = vrot.slane %v305, 1
        %v307 = vadd.f32 %v305, %v306
        %v308 = vsel %vm247, %v282, 0.0
        %v309 = vrot.slane %v308, 4
        %v310 = vadd.f32 %v308, %v309
        %v311 = vrot.slane %v310, 2
        %v312 = vadd.f32 %v310, %v311
        %v313 = vrot.slane %v312, 1
        %v314 = vadd.f32 %v312, %v313
        %v315 = vadd.f32 %v293, %v300
        %316 = vadd.xlane.f32.xlu0 %v315
        %v317 = vpop.xlane.xlu0 %316
        %v318 = vadd.f32 %v307, %v314
        %319 = vadd.xlane.f32.xlu0 %v318
        %v320 = vpop.xlane.xlu0 %319
        %v321 = vmul.f32 %v317, 0.00390625
        %v322 = vmul.f32 %v320, 0.00390625
        %v323 = vsub.f32 %v293, %v321
        %v324 = vsub.f32 %v300, %v321
        %v325 = vsub.f32 %v307, %v322
        %v326 = vsub.f32 %v314, %v322
        %v327 = vmul.f32 %v323, %v323
        %v328 = vmul.f32 %v324, %v324
        %v329 = vmul.f32 %v325, %v325
        %v330 = vmul.f32 %v326, %v326
        %v331 = vadd.f32 %v327, %v328
        %332 = vadd.xlane.f32.xlu0 %v331
        %v333 = vpop.xlane.xlu0 %332
        %v334 = vadd.f32 %v329, %v330
        %335 = vadd.xlane.f32.xlu0 %v334
        %v336 = vpop.xlane.xlu0 %335
        %v337 = vmul.f32 %v333, 0.003921569
        %v338 = vmul.f32 %v336, 0.003921569
        %v339 = vrsqrt.pop %v337
        %v340 = vmul.f32 %v339, %v337
        %v341 = vmul.f32 %v340, %v339
        %v342 = vmul.f32 0.5, %v341
        %v343 = vsub.f32 1.5, %v342
        %v344 = vmul.f32 %v339, %v343
        %v345 = vmul.f32 %v337, %v344
        %vm346 = vcmp.eq.f32.partialorder %v337, inf
        %v347 = vsel %vm346, %v337, %v345
        %vm348 = vcmp.eq.f32.partialorder %v337, 0.0
        %v349 = vand.u32 %v337, 2147483648
        %v350 = vsel %vm348, %v349, %v347
        %v351 = vrsqrt.pop %v338
        %v352 = vmul.f32 %v351, %v338
        %v353 = vmul.f32 %v352, %v351
        %v354 = vmul.f32 0.5, %v353
        %v355 = vsub.f32 1.5, %v354
        %v356 = vmul.f32 %v351, %v355
        %v357 = vmul.f32 %v338, %v356
        %vm358 = vcmp.eq.f32.partialorder %v338, inf
        %v359 = vsel %vm358, %v338, %v357
        %vm360 = vcmp.eq.f32.partialorder %v338, 0.0
        %v361 = vand.u32 %v338, 2147483648
        %v362 = vsel %vm360, %v361, %v359
        %v363 = vadd.f32 %v350, 1e-05
        %v364 = vadd.f32 %v362, 1e-05
        %v365 = vadd.f32 %v323, 1e-05
        %v366 = vadd.f32 %v324, 1e-05
        %v367 = vadd.f32 %v325, 1e-05
        %v368 = vadd.f32 %v326, 1e-05
        %v369 = vrcp.pop %v363
        %v370 = vmul.f32 %v363, %v369
        %v371 = vsub.f32 1.0, %v370
        %v372 = vmul.f32 %v369, %v371
        %v373 = vadd.f32 %v369, %v372
        %vm374 = vweird.f32 %v363
        %vm375 = vweird.f32 %v369
        %vm376 = vmor %vm374, %vm375
        %v377 = vsel %vm376, %v369, %v373
        %v378 = vand.u32 2147483647, %v363
        %vm379 = vcmp.eq.f32.partialorder %v378, 8.507059e+37
        %v380 = vand.u32 %v363, 2147483648
        %v381 = vor.u32 1.1754944e-38, %v380
        %v382 = vsel %vm379, %v381, %v377
        %v383 = vrcp.pop %v364
        %v384 = vmul.f32 %v364, %v383
        %v385 = vsub.f32 1.0, %v384
        %v386 = vmul.f32 %v383, %v385
        %v387 = vadd.f32 %v383, %v386
        %vm388 = vweird.f32 %v364
        %vm389 = vweird.f32 %v383
        %vm390 = vmor %vm388, %vm389
        %v391 = vsel %vm390, %v383, %v387
        %v392 = vand.u32 2147483647, %v364
        %vm393 = vcmp.eq.f32.partialorder %v392, 8.507059e+37
        %v394 = vand.u32 %v364, 2147483648
        %v395 = vor.u32 1.1754944e-38, %v394
        %v396 = vsel %vm393, %v395, %v391
        %v397 = vmul.f32 %v365, %v382
        %v398 = vmul.f32 %v366, %v382
        %v399 = vmul.f32 %v367, %v396
        %v400 = vmul.f32 %v368, %v396
        %v401 = vld [vmem:[%s223] sm:$0x1]
        %v402 = vld [vmem:[%s223 + $0x1] sm:$0x1]
        %404 = vset.pattern.permute.xlu0 0
        %405 = vperm.xlu0 %404, %v401
        %v406 = vpop.permute.xlu0 %405
        %v408 = vperm.slane %v406, 0
        %410 = vset.pattern.permute.xlu0 0
        %411 = vperm.xlu0 %410, %v402
        %v412 = vpop.permute.xlu0 %411
        %v414 = vperm.slane %v412, 0
        %v415 = vmul.f32 %v397, %v408
        %v416 = vmul.f32 %v398, %v408
        %v417 = vmul.f32 %v399, %v414
        %v418 = vmul.f32 %v400, %v414
        %v419 = vld [vmem:[%s228] sm:$0x1]
        %v420 = vld [vmem:[%s228 + $0x1] sm:$0x1]
        %422 = vset.pattern.permute.xlu0 0
        %423 = vperm.xlu0 %422, %v419
        %v424 = vpop.permute.xlu0 %423
        %v426 = vperm.slane %v424, 0
        %428 = vset.pattern.permute.xlu0 0
        %429 = vperm.xlu0 %428, %v420
        %v430 = vpop.permute.xlu0 %429
        %v432 = vperm.slane %v430, 0
        %v433 = vadd.f32 %v415, %v426
        %v434 = vadd.f32 %v416, %v426
        %v435 = vadd.f32 %v417, %v432
        %v436 = vadd.f32 %v418, %v432
        %v437 = vxor.u32 %v433, 2147483648
        %v438 = vxor.u32 %v434, 2147483648
        %v439 = vxor.u32 %v435, 2147483648
        %v440 = vxor.u32 %v436, 2147483648
        %v441 = vmul.f32 %v437, 1.442695
        %v442 = vpow.pop %v441
        %v443 = vmul.f32 %v438, 1.442695
        %v444 = vpow.pop %v443
        %v445 = vmul.f32 %v439, 1.442695
        %v446 = vpow.pop %v445
        %v447 = vmul.f32 %v440, 1.442695
        %v448 = vpow.pop %v447
        %v449 = vadd.f32 %v442, 1.0
        %v450 = vadd.f32 %v444, 1.0
        %v451 = vadd.f32 %v446, 1.0
        %v452 = vadd.f32 %v448, 1.0
        %v453 = vrcp.pop %v449
        %v454 = vmul.f32 %v449, %v453
        %v455 = vsub.f32 1.0, %v454
        %v456 = vmul.f32 %v453, %v455
        %v457 = vadd.f32 %v453, %v456
        %vm458 = vweird.f32 %v449
        %vm459 = vweird.f32 %v453
        %vm460 = vmor %vm458, %vm459
        %v461 = vsel %vm460, %v453, %v457
        %v462 = vand.u32 2147483647, %v449
        %vm463 = vcmp.eq.f32.partialorder %v462, 8.507059e+37
        %v464 = vand.u32 %v449, 2147483648
        %v465 = vor.u32 1.1754944e-38, %v464
        %v466 = vsel %vm463, %v465, %v461
        %v467 = vmul.f32 1.0, %v466
        %v468 = vrcp.pop %v450
        %v469 = vmul.f32 %v450, %v468
        %v470 = vsub.f32 1.0, %v469
        %v471 = vmul.f32 %v468, %v470
        %v472 = vadd.f32 %v468, %v471
        %vm473 = vweird.f32 %v450
        %vm474 = vweird.f32 %v468
        %vm475 = vmor %vm473, %vm474
        %v476 = vsel %vm475, %v468, %v472
        %v477 = vand.u32 2147483647, %v450
        %vm478 = vcmp.eq.f32.partialorder %v477, 8.507059e+37
        %v479 = vand.u32 %v450, 2147483648
        %v480 = vor.u32 1.1754944e-38, %v479
        %v481 = vsel %vm478, %v480, %v476
        %v482 = vmul.f32 1.0, %v481
        %v483 = vrcp.pop %v451
        %v484 = vmul.f32 %v451, %v483
        %v485 = vsub.f32 1.0, %v484
        %v486 = vmul.f32 %v483, %v485
        %v487 = vadd.f32 %v483, %v486
        %vm488 = vweird.f32 %v451
        %vm489 = vweird.f32 %v483
        %vm490 = vmor %vm488, %vm489
        %v491 = vsel %vm490, %v483, %v487
        %v492 = vand.u32 2147483647, %v451
        %vm493 = vcmp.eq.f32.partialorder %v492, 8.507059e+37
        %v494 = vand.u32 %v451, 2147483648
        %v495 = vor.u32 1.1754944e-38, %v494
        %v496 = vsel %vm493, %v495, %v491
        %v497 = vmul.f32 1.0, %v496
        %v498 = vrcp.pop %v452
        %v499 = vmul.f32 %v452, %v498
        %v500 = vsub.f32 1.0, %v499
        %v501 = vmul.f32 %v498, %v500
        %v502 = vadd.f32 %v498, %v501
        %vm503 = vweird.f32 %v452
        %vm504 = vweird.f32 %v498
        %vm505 = vmor %vm503, %vm504
        %v506 = vsel %vm505, %v498, %v502
        %v507 = vand.u32 2147483647, %v452
        %vm508 = vcmp.eq.f32.partialorder %v507, 8.507059e+37
        %v509 = vand.u32 %v452, 2147483648
        %v510 = vor.u32 1.1754944e-38, %v509
        %v511 = vsel %vm508, %v510, %v506
        %v512 = vmul.f32 1.0, %v511
        %v517 = vrot.slane %v482, 4
        %v518 = vrot.slane %v512, 4
        %v519 = vsel %vm247, %v467, %v517
        %v520 = vsel %vm247, %v497, %v518
        %v523 = vmul.f32 %v232, %v519
        %v524 = vmul.f32 %v233, %v520
        %525 = vst [vmem:[%s219] sm:$0xff] %v523
        %526 = vst [vmem:[%s219 + $0x8] sm:$0xff] %v524
        %s527 = sand.u32 %s106, 1
        %s528 = scalar_lea.sflag [#allocation4], %s527
        %s529 = sand.u32 %s106, 1
        %s530 = smul.addr %s529, 16
        %s531 = scalar_lea.vmem [#allocation5], %s530
        // Predicated region
        $region37: #{tpu_custom_call.1} parent=31 // pred_check
          %p532 = pneg %p116
        $region38: #{tpu_custom_call.1} parent=31 // pred_check_branch
          %534 = sbr.rel (%p532) target = $region40
        $region39: #{tpu_custom_call.1} parent=31 // pred_region
          %s535 = smul.u32 2, %s20
          %537 = vsyncadd %s528, 0
          %s538 = smul.addr %s535, 2
          %s539 = smul.addr %s538, 4
          %s540 = scalar_lea.hbm %s3, %s539
          %s541 = sshll.u32 %s531, 4
          %s542 = int_to_ptr.vmem [resolvable:$true] %s541
          %s543 = sshll.u32 %s540, 4
          %s544 = int_to_ptr.hbm [resolvable:$true] %s543
          %549 = dma.vmem_to_hbm [thread:$0]  %s542, 256, %s544, %s528, 128, 128, 8
        $region40: #{tpu_custom_call.1} parent=31 // pred_fallthru
          _
      $region32: #{tpu_custom_call.1} parent=5 // pred_fallthru
        _
      %p550 = scmp.le.s32.totalorder 2, %s15
      // Predicated region
      $region41: #{tpu_custom_call.1} parent=5 // pred_check
        %p551 = pneg %p550
      $region42: #{tpu_custom_call.1} parent=5 // pred_check_branch
        %553 = sbr.rel (%p551) target = $region44
      $region43: #{tpu_custom_call.1} parent=5 // pred_region
        %s554 = ssub.s32 %s15, 2
        // Predicated region
        $region45: #{tpu_custom_call.1} parent=43 // pred_check
          %p555 = pneg %p122
        $region46: #{tpu_custom_call.1} parent=43 // pred_check_branch
          %557 = sbr.rel (%p555) target = $region48
        $region47: #{tpu_custom_call.1} parent=43 // pred_region
          %s558 = sand.u32 %s107, 1
          %s559 = scalar_lea.sflag [#allocation4], %s558
          %s560 = sand.u32 %s107, 1
          %s561 = smul.addr %s560, 16
          %s562 = scalar_lea.vmem [#allocation5], %s561
          %564 = dma.done %s559, 256
        $region48: #{tpu_custom_call.1} parent=43 // pred_fallthru
          _
      $region44: #{tpu_custom_call.1} parent=5 // pred_fallthru
        _
    $region6: #{tpu_custom_call.1} parent=1 // loop_footer
      %s19 = sadd.s32 1, %s15
    $region7: #{tpu_custom_call.1} parent=1 // loop_footer_branch
      %14 = sbr.rel target = $region3
    $region8: #{tpu_custom_call.1} parent=1 // loop_exit
      _
    %565 = vsyncpa [#allocation3], 1
    %s566 = scalar_lea.sflag [#allocation3], 1
    %567 = vsyncpa %s566, 1
    %568 = vsyncpa [#allocation4], 1
    %s569 = scalar_lea.sflag [#allocation4], 1
    %570 = vsyncpa %s569, 1

</llo_original>
